<compile_context>
chip_gen: v7x
topology: tpu7x:2x2x1
jax: 0.10.0
libtpu: 0.0.40
codegen_flags: <defaults>
</compile_context>

<pallas_src>
import functools

import jax
import jax.numpy as jnp
from jax.experimental import pallas as pl
from jax.experimental.pallas import tpu as pltpu


def _cdiv(a, b):
    return (a + b - 1) // b


def _round_up(x, m):
    return _cdiv(x, m) * m


def _largest_aligned_divisor(dim, max_tile, align):
    """Largest multiple of `align` that divides `dim` and is <= max_tile (0 if none)."""
    t = (max_tile // align) * align
    while t >= align:
        if dim % t == 0:
            return t
        t -= align
    return 0


def _dense_kernel(x_ref, w_ref, *rest, negative_slope, has_bias, use_scratch,
                  k_steps):
    """rest = ([b_ref,] o_ref[, acc_ref])  (scratch only when use_scratch)."""
    i = 0
    b_ref = None
    if has_bias:
        b_ref = rest[i]
        i += 1
    o_ref = rest[i]
    i += 1
    # Accumulate either into an f32 VMEM scratch or directly into the (f32)
    # output tile, which is resident across the K grid axis.
    acc_ref = rest[i] if use_scratch else o_ref

    part = jnp.dot(x_ref[...], w_ref[...], preferred_element_type=jnp.float32)

    def _activate(acc):
        if has_bias:
            acc = acc + b_ref[...].astype(jnp.float32)
        return jnp.where(acc > 0, acc, negative_slope * acc).astype(o_ref.dtype)

    if k_steps == 1:
        # Single K step: no accumulator round-trip at all.
        o_ref[...] = _activate(part)
        return

    k = pl.program_id(2)

    @pl.when(k == 0)
    def _():
        acc_ref[...] = part          # first step: plain store, no zero-fill+RMW

    @pl.when(k > 0)
    def _():
        acc_ref[...] += part

    @pl.when(k == k_steps - 1)
    def _():
        o_ref[...] = _activate(acc_ref[...].astype(jnp.float32))


def dense_forward(x, weights, bias=None, *, negative_slope=0.01,
                  tm=512, tn=512, tk=512, max_full_k=1024,
                  compute_dtype=None):
    """Pallas implementation of Dense.forward: LeakyReLU(x @ W [+ b]).

    compute_dtype: optional opt-in lower-precision MXU path (e.g. jnp.bfloat16).
    Output dtype stays x.dtype; numerics change slightly when set.
    """
    M, K = x.shape
    K2, N = weights.shape
    assert K == K2, "input_dim mismatch"
    out_dtype = x.dtype

    if compute_dtype is not None:
        x = x.astype(compute_dtype)
        weights = weights.astype(compute_dtype)

    itemsize = x.dtype.itemsize
    sub = {4: 8, 2: 16, 1: 32}.get(itemsize, 8)   # sublane tile per dtype

    # ---- M tiling: full-extent when it fits, else aligned tiles + implicit
    #      partial last block (no padding needed, OOB rows masked on store). --
    if M <= tm:
        tm = M
    else:
        tm = max(sub, _round_up(tm, sub))
    grid_m = _cdiv(M, tm)

    # ---- N tiling: full-extent when it fits, else a 128-multiple tile
    #      (exact divisor preferred; partial last block otherwise is safe). ---
    if N <= tn:
        tn = N
    else:
        tn = _largest_aligned_divisor(N, tn, 128) or max(128, (tn // 128) * 128)
    grid_n = _cdiv(N, tn)

    # Megacore occupancy: make sure there are >= 2 (i, j) tiles when M is big
    # enough, so both TensorCores (v7x) / megacore halves get work.
    if grid_m * grid_n == 1 and M >= 512:
        tm = _round_up(_cdiv(M, 2), sub)
        grid_m = _cdiv(M, tm)

    # ---- K tiling: must divide (possibly padded) K exactly for correctness. -
    pad_k = 0
    if K <= max_full_k:
        tk = K                                     # single K step, no grid axis
    else:
        d = _largest_aligned_divisor(K, tk, 128)
        if d:
            tk = d                                 # exact divisor, no padding
        else:
            kp = _round_up(K, 128)                 # rare fallback: zero-pad K
            tk = _largest_aligned_divisor(kp, tk, 128) or 128
            pad_k = kp - K
    grid_k = _cdiv(K + pad_k, tk)

    if pad_k:
        # Zeros contribute nothing to the dot product.
        x = jnp.pad(x, ((0, 0), (0, pad_k)))
        weights = jnp.pad(weights, ((0, pad_k), (0, 0)))

    has_bias = bias is not None
    use_scratch = (grid_k > 1) and (out_dtype != jnp.float32)

    kernel = functools.partial(
        _dense_kernel,
        negative_slope=negative_slope,
        has_bias=has_bias,
        use_scratch=use_scratch,
        k_steps=grid_k,
    )

    if grid_k > 1:
        grid = (grid_m, grid_n, grid_k)
        x_spec = pl.BlockSpec((tm, tk), lambda i, j, k: (i, k))
        w_spec = pl.BlockSpec((tk, tn), lambda i, j, k: (k, j))
        o_spec = pl.BlockSpec((tm, tn), lambda i, j, k: (i, j))
        b_spec = pl.BlockSpec((1, tn), lambda i, j, k: (0, j))
        semantics = ("parallel", "parallel", "arbitrary")
    else:
        grid = (grid_m, grid_n)
        x_spec = pl.BlockSpec((tm, tk), lambda i, j: (i, 0))
        w_spec = pl.BlockSpec((tk, tn), lambda i, j: (0, j))
        o_spec = pl.BlockSpec((tm, tn), lambda i, j: (i, j))
        b_spec = pl.BlockSpec((1, tn), lambda i, j: (0, j))
        semantics = ("parallel", "parallel")

    in_specs = [x_spec, w_spec]
    operands = [x, weights]
    if has_bias:
        in_specs.append(b_spec)
        operands.append(bias.astype(jnp.float32).reshape(1, N))

    scratch = [pltpu.VMEM((tm, tn), jnp.float32)] if use_scratch else []

    cost = pl.CostEstimate(
        flops=2 * M * N * K,
        transcendentals=0,
        bytes_accessed=itemsize * (M * K + K * N)
        + jnp.dtype(out_dtype).itemsize * M * N
        + (4 * N if has_bias else 0),
    )

    return pl.pallas_call(
        kernel,
        out_shape=jax.ShapeDtypeStruct((M, N), out_dtype),
        grid=grid,
        in_specs=in_specs,
        out_specs=o_spec,
        scratch_shapes=scratch,
        compiler_params=pltpu.CompilerParams(dimension_semantics=semantics),
        cost_estimate=cost,
    )(*operands)


def init_glorot(key, shape, dtype=jnp.float32):
    """Glorot/Xavier uniform init, matching the reference init_glorot([in, out])."""
    fan_in, fan_out = shape
    limit = jnp.sqrt(6.0 / (fan_in + fan_out))
    return jax.random.uniform(key, shape, dtype=dtype, minval=-limit, maxval=limit)


def reference_forward(x, weights, bias=None, negative_slope=0.01):
    out = jnp.dot(x.astype(jnp.float32), weights.astype(jnp.float32),
                  precision=jax.lax.Precision.HIGHEST)
    if bias is not None:
        out = out + bias
    return jnp.where(out > 0, out, negative_slope * out)


if __name__ == "__main__":
    key = jax.random.PRNGKey(0)
    k_x, k_w, k_b, k_x2, k_w2, k_x3, k_w3, k_x4, k_w4 = jax.random.split(key, 9)

    # 1) Module defaults (bias=False, LeakyReLU), tiny features:
    #    full-extent K (<128) and N (<128) blocks, single K step, no padding.
    batch, input_dim, output_dim = 16, 32, 64
    x = jax.random.normal(k_x, (batch, input_dim), dtype=jnp.float32)
    weights = init_glorot(k_w, (input_dim, output_dim))
    out = jax.block_until_ready(dense_forward(x, weights))
    ref = reference_forward(x, weights)
    assert out.shape == (batch, output_dim)
    assert jnp.allclose(out, ref, atol=1e-5, rtol=1e-5), "mismatch (no-bias)"

    # 2) bias=True path of the module (random bias for a stronger check).
    bias = 0.1 * jax.random.normal(k_b, (output_dim,), dtype=jnp.float32)
    out_b = jax.block_until_ready(dense_forward(x, weights, bias=bias))
    ref_b = reference_forward(x, weights, bias=bias)
    assert jnp.allclose(out_b, ref_b, atol=1e-5, rtol=1e-5), "mismatch (bias)"

    # 3) Non-multiple batch, K/N that need no padding: M=300 full-extent rows,
    #    K=640 full-extent (single K step), N=384 full-extent.
    x2 = jax.random.normal(k_x2, (300, 640), dtype=jnp.float32)
    w2 = init_glorot(k_w2, (640, 384))
    out2 = jax.block_until_ready(dense_forward(x2, w2))
    ref2 = reference_forward(x2, w2)
    assert jnp.allclose(out2, ref2, atol=1e-4, rtol=1e-4), "mismatch (300x640)"

    # 4) Multi-K-step f32 path (accumulates directly into the output tile).
    x3 = jax.random.normal(k_x3, (64, 384), dtype=jnp.float32)
    w3 = init_glorot(k_w3, (384, 256))
    out3 = jax.block_until_ready(dense_forward(x3, w3, tk=128, max_full_k=128))
    ref3 = reference_forward(x3, w3)
    assert jnp.allclose(out3, ref3, atol=1e-4, rtol=1e-4), "mismatch (multi-K f32)"

    # 5) Multi-K-step bf16 path (f32 VMEM scratch accumulator); looser tol.
    x4 = jax.random.normal(k_x4, (32, 384), dtype=jnp.float32).astype(jnp.bfloat16)
    w4 = init_glorot(k_w4, (384, 128)).astype(jnp.bfloat16)
    out4 = jax.block_until_ready(dense_forward(x4, w4, tk=128, max_full_k=128))
    ref4 = reference_forward(x4, w4).astype(jnp.bfloat16)
    assert jnp.allclose(out4.astype(jnp.float32), ref4.astype(jnp.float32),
                        atol=5e-2, rtol=5e-2), "mismatch (multi-K bf16)"

    print("KERNEL_OK")
</pallas_src>

<mosaic_0001>
module attributes {stable_mosaic.version = 11 : i64} {
  func.func @_dense_kernel(%arg0: i32, %arg1: i32, %arg2: memref<16x32xf32, #tpu.memory_space<vmem>>, %arg3: memref<32x64xf32, #tpu.memory_space<vmem>>, %arg4: memref<16x64xf32, #tpu.memory_space<vmem>>) attributes {dimension_semantics = [#tpu.dimension_semantics<parallel>, #tpu.dimension_semantics<parallel>], iteration_bounds = array<i64: 1, 1>, scalar_prefetch = 0 : i64, scratch_operands = 0 : i64, tpu.core_type = #tpu.core_type<tc>, window_params = [{transform_indices = @transform_0, window_bounds = array<i64: 16, 32>}, {transform_indices = @transform_1, window_bounds = array<i64: 32, 64>}, {transform_indices = @transform_2, window_bounds = array<i64: 16, 64>}]} {
    %c0 = arith.constant 0 : index
    %c0_0 = arith.constant 0 : index
    %0 = vector.load %arg2[%c0, %c0_0] : memref<16x32xf32, #tpu.memory_space<vmem>>, vector<16x32xf32>
    %c0_1 = arith.constant 0 : index
    %c0_2 = arith.constant 0 : index
    %1 = vector.load %arg3[%c0_1, %c0_2] : memref<32x64xf32, #tpu.memory_space<vmem>>, vector<32x64xf32>
    %cst = arith.constant dense<0.000000e+00> : vector<16x64xf32>
    %2 = tpu.matmul %0, %1, %cst {dimension_numbers = #tpu.dot_dimension_numbers<[1], [0], [0], [1], [0, 0, 1, 1], [], []>} : vector<16x32xf32>, vector<32x64xf32>, vector<16x64xf32> -> vector<16x64xf32>
    %cst_3 = arith.constant 0.000000e+00 : f32
    %3 = vector.broadcast %cst_3 : f32 to vector<16x64xf32>
    %4 = arith.cmpf ogt, %2, %3 : vector<16x64xf32>
    %cst_4 = arith.constant 0.00999999977 : f32
    %5 = vector.broadcast %cst_4 : f32 to vector<16x64xf32>
    %6 = arith.mulf %5, %2 : vector<16x64xf32>
    %7 = arith.select %4, %2, %6 : vector<16x64xi1>, vector<16x64xf32>
    %c0_5 = arith.constant 0 : index
    %c0_6 = arith.constant 0 : index
    %8 = vector.load %arg4[%c0_5, %c0_6] : memref<16x64xf32, #tpu.memory_space<vmem>>, vector<16x64xf32>
    tpu.vector_store %arg4[%c0_5, %c0_6], %7 {strides = array<i32>} : memref<16x64xf32, #tpu.memory_space<vmem>>, vector<16x64xf32>,
    return
  }
  func.func @transform_0(%arg0: i32, %arg1: i32) -> (i32, i32) {
    %c0_i32 = arith.constant 0 : i32
    %c0_i32_0 = arith.constant 0 : i32
    return %arg0, %c0_i32 : i32, i32
  }
  func.func @transform_1(%arg0: i32, %arg1: i32) -> (i32, i32) {
    %c0_i32 = arith.constant 0 : i32
    %c0_i32_0 = arith.constant 0 : i32
    return %c0_i32, %arg1 : i32, i32
  }
  func.func @transform_2(%arg0: i32, %arg1: i32) -> (i32, i32) {
    %c0_i32 = arith.constant 0 : i32
    return %arg0, %arg1 : i32, i32
  }
}

</mosaic_0001>

<llo_original>
// kernel: tpu_custom_call.1
$region0: #{tpu_custom_call.1}
  #allocation0 [shape = 'u32[]', space=smem, size = 0x4, offset = 0x4, fixed_abs, tag = 'smem constant byte address 0x4 - core index']
  #allocation1 [shape = 'u32[144,128]{1,0:T(1,128)}', space=vmem, size = 0x12000, scoped, tag = 'internal scratch']
  %s0 = inlined_call_operand.hbm [shape: f32[16,32], index: 0, kind: input, shape index: {}]
  %s1 = inlined_call_operand.hbm [shape: f32[32,64], index: 1, kind: input, shape index: {}]
  %s2 = inlined_call_operand.hbm [shape: f32[16,64], index: 2, kind: output, shape index: {}]
  %s3 = sld [smem:[#allocation0]]
  $region26: #{tpu_custom_call.1} parent=0
    _
  %s5 = ssub.s32 1, %s3
  %s6 = scalar_select 0, %s5, %s3
  $region1: #{tpu_custom_call.1} parent=0
    #allocation2 [shape = 'u8[8192]{0}', space=vmem, size = 0x2000, scoped, tag = 'input window, operand 0, single buffered']
    #allocation3 [shape = 's32[1]{0}', space=sflag, size = 0x4, scoped, tag = 'scoped memory for tpu_custom_call.1']
    #allocation4 [shape = 's32[1]{0}', space=sflag, size = 0x4, scoped, tag = 'scoped memory for tpu_custom_call.1']
    #allocation5 [shape = 'u8[16384]{0}', space=vmem, size = 0x4000, scoped, tag = 'input window, operand 1, single buffered']
    #allocation6 [shape = 's32[1]{0}', space=sflag, size = 0x4, scoped, tag = 'scoped memory for tpu_custom_call.1']
    #allocation7 [shape = 'u8[8192]{0}', space=vmem, size = 0x2000, scoped, tag = 'output window, operand 0, single buffered']
    %7 = vsyncpa [#allocation3], 0
    %8 = vsyncpa [#allocation6], 0
    %9 = vsyncpa [#allocation4], 0
    // Predicated region
    $region2: #{tpu_custom_call.1} parent=1 // pred_check
      _
    $region3: #{tpu_custom_call.1} parent=1 // pred_check_branch
      %11 = sbr.rel (0) target = $region5
    $region4: #{tpu_custom_call.1} parent=1 // pred_region
      %s13 = ssub.s32 256, 256
      %14 = vsyncadd [#allocation3], %s13
      %s15 = sshll.u32 [#allocation2], 4
      %s16 = int_to_ptr.vmem [resolvable:$true] %s15
      %21 = dma.hbm_to_vmem [thread:$0]  %s0, 256, %s16, [#allocation3], 128, 128, 8
    $region5: #{tpu_custom_call.1} parent=1 // pred_fallthru
      _
    // Predicated region
    $region6: #{tpu_custom_call.1} parent=1 // pred_check
      _
    $region7: #{tpu_custom_call.1} parent=1 // pred_check_branch
      %23 = sbr.rel (0) target = $region9
    $region8: #{tpu_custom_call.1} parent=1 // pred_region
      %s25 = ssub.s32 512, 512
      %26 = vsyncadd [#allocation6], %s25
      %s27 = sshll.u32 [#allocation5], 4
      %s28 = int_to_ptr.vmem [resolvable:$true] %s27
      %33 = dma.hbm_to_vmem [thread:$0]  %s1, 512, %s28, [#allocation6], 128, 128, 8
    $region9: #{tpu_custom_call.1} parent=1 // pred_fallthru
      _
    // Predicated region
    $region10: #{tpu_custom_call.1} parent=1 // pred_check
      _
    $region11: #{tpu_custom_call.1} parent=1 // pred_check_branch
      %35 = sbr.rel (0) target = $region13
    $region12: #{tpu_custom_call.1} parent=1 // pred_region
      %36 = dma.done [#allocation3], 256
    $region13: #{tpu_custom_call.1} parent=1 // pred_fallthru
      _
    // Predicated region
    $region14: #{tpu_custom_call.1} parent=1 // pred_check
      _
    $region15: #{tpu_custom_call.1} parent=1 // pred_check_branch
      %38 = sbr.rel (0) target = $region17
    $region16: #{tpu_custom_call.1} parent=1 // pred_region
      %39 = dma.done [#allocation6], 512
    $region17: #{tpu_custom_call.1} parent=1 // pred_fallthru
      _
    %v40 = vld [vmem:[#allocation2] sm:$0xff]
    %v41 = vld [vmem:[#allocation2 + $0x8] sm:$0xff]
    %v42 = vld [vmem:[#allocation5] sm:$0xff]
    %v43 = vld [vmem:[#allocation5 + $0x8] sm:$0xff]
    %v44 = vld [vmem:[#allocation5 + $0x10] sm:$0xff]
    %v45 = vld [vmem:[#allocation5 + $0x18] sm:$0xff]
    %vm46 = vcmask 261120
    %v48 = vsel %vm46, %v40, 0
    %v51 = vsel %vm46, %v41, 0
    %53 = vmatprep.subr.mxu0 0.0
    %54 = vmatpush1.msra.mxu0 %v42
    %55 = vmatprep.subr.mxu0 0.0
    %56 = vmatpush1.msra.mxu0 %v43
    %57 = vmatprep.subr.mxu0 0.0
    %58 = vmatpush1.msra.mxu0 %v44
    %59 = vmatprep.subr.mxu0 0.0
    %60 = vmatpush1.msra.mxu0 %v45
    %61 = vmatprep.subr.mxu0 0.0
    %62 = vmatpush1.msra.mxu0 0.0
    %63 = vmatprep.subr.mxu0 0.0
    %64 = vmatpush1.msra.mxu0 0.0
    %65 = vmatprep.subr.mxu0 0.0
    %66 = vmatpush1.msra.mxu0 0.0
    %67 = vmatprep.subr.mxu0 0.0
    %68 = vmatpush1.msra.mxu0 0.0
    %69 = vmatprep.subr.mxu0 0.0
    %70 = vmatpush1.msra.mxu0 0.0
    %71 = vmatprep.subr.mxu0 0.0
    %72 = vmatpush1.msra.mxu0 0.0
    %73 = vmatprep.subr.mxu0 0.0
    %74 = vmatpush1.msra.mxu0 0.0
    %75 = vmatprep.subr.mxu0 0.0
    %76 = vmatpush1.msra.mxu0 0.0
    %77 = vmatprep.subr.mxu0 0.0
    %78 = vmatpush1.msra.mxu0 0.0
    %79 = vmatprep.subr.mxu0 0.0
    %80 = vmatpush1.msra.mxu0 0.0
    %81 = vmatprep.subr.mxu0 0.0
    %82 = vmatpush1.msra.mxu0 0.0
    %83 = vmatprep.subr.mxu0 0.0
    %84 = vmatpush1.msra.mxu0 0.0
    %85 = vmatprep.subr.mxu0 0.0
    %86 = vmatpush1.msra.mxu0 0.0
    %87 = vmatprep.subr.mxu0 0.0
    %88 = vmatpush1.msra.mxu0 0.0
    %89 = vmatprep.subr.mxu0 0.0
    %90 = vmatpush1.msra.mxu0 0.0
    %91 = vmatprep.subr.mxu0 0.0
    %92 = vmatpush1.msra.mxu0 0.0
    %93 = vmatprep.subr.mxu0 0.0
    %94 = vmatpush1.msra.mxu0 0.0
    %95 = vmatprep.subr.mxu0 0.0
    %96 = vmatpush1.msra.mxu0 0.0
    %97 = vmatprep.subr.mxu0 0.0
    %98 = vmatpush1.msra.mxu0 0.0
    %99 = vmatprep.subr.mxu0 0.0
    %100 = vmatpush1.msra.mxu0 0.0
    %101 = vmatprep.subr.mxu0 0.0
    %102 = vmatpush1.msra.mxu0 0.0
    %103 = vmatprep.subr.mxu0 0.0
    %104 = vmatpush1.msra.mxu0 0.0
    %105 = vmatprep.subr.mxu0 0.0
    %106 = vmatpush1.msra.mxu0 0.0
    %107 = vmatprep.subr.mxu0 0.0
    %108 = vmatpush1.msra.mxu0 0.0
    %109 = vmatprep.subr.mxu0 0.0
    %110 = vmatpush1.msra.mxu0 0.0
    %111 = vmatprep.subr.mxu0 0.0
    %112 = vmatpush1.msra.mxu0 0.0
    %113 = vmatprep.subr.mxu0 0.0
    %114 = vmatpush1.msra.mxu0 0.0
    %115 = vmatprep.subr.mxu0 0.0
    %116 = vmatpush1.msra.mxu0 0.0
    %117 = vmatprep.mubr.f32.mxu0 0.0
    %118 = vmatmul.mubr.f32.gmra.mrb[0].mxu0 %v48
    %v119 = vpop.f32.mrb[0].mxu0
    %v120 = vadd.f32 0.0, %v119
    %v121 = vpop.f32.mrb[0].mxu0
    %122 = vmatprep.mubr.f32.mxu0 0.0
    %123 = vmatmul.mubr.f32.gmra.mrb[0].mxu0 %v51
    %v124 = vpop.f32.mrb[0].mxu0
    %v125 = vadd.f32 0.0, %v124
    %v126 = vpop.f32.mrb[0].mxu0
    %127 = vdwg.mxu0
    %vm128 = vcmp.gt.f32.partialorder %v120, 0.0
    %vm129 = vcmp.gt.f32.partialorder %v125, 0.0
    %v130 = vmul.f32 %v120, 0.01
    %v131 = vmul.f32 %v125, 0.01
    %v132 = vsel %vm128, %v120, %v130
    %v133 = vsel %vm129, %v125, %v131
    %vm134 = vcmask 523264
    %135 = vst.msk [vmem:[#allocation7] sm:$0xff] %vm134, %v132
    %136 = vst.msk [vmem:[#allocation7 + $0x8] sm:$0xff] %vm134, %v133
    // Predicated region
    $region18: #{tpu_custom_call.1} parent=1 // pred_check
      _
    $region19: #{tpu_custom_call.1} parent=1 // pred_check_branch
      %138 = sbr.rel (0) target = $region21
    $region20: #{tpu_custom_call.1} parent=1 // pred_region
      %s140 = ssub.s32 256, 256
      %141 = vsyncadd [#allocation4], %s140
      %s142 = sshll.u32 [#allocation7], 4
      %s143 = int_to_ptr.vmem [resolvable:$true] %s142
      %148 = dma.vmem_to_hbm [thread:$0]  %s143, 256, %s2, [#allocation4], 128, 128, 8
    $region21: #{tpu_custom_call.1} parent=1 // pred_fallthru
      _
    // Predicated region
    $region22: #{tpu_custom_call.1} parent=1 // pred_check
      _
    $region23: #{tpu_custom_call.1} parent=1 // pred_check_branch
      %150 = sbr.rel (0) target = $region25
    $region24: #{tpu_custom_call.1} parent=1 // pred_region
      %151 = dma.done [#allocation4], 256
    $region25: #{tpu_custom_call.1} parent=1 // pred_fallthru
      _
    %152 = vsyncpa [#allocation3], 1
    %153 = vsyncpa [#allocation6], 1
    %154 = vsyncpa [#allocation4], 1

</llo_original>
